<compile_context>
chip_gen: v6e
topology: v6e:2x2x1
jax: 0.10.0
libtpu: 0.0.40
codegen_flags: <defaults>
</compile_context>

<pallas_src>
import jax
import jax.numpy as jnp
from jax.experimental import pallas as pl
from jax.experimental.pallas import tpu as pltpu

N_ACT = 4
LANE = 128
TARGET_BLOCK_BYTES = 2 * 1024 * 1024   # ~2 MiB per block per buffer (v5e-safe)
MIN_GRID_STEPS = 8                     # keep the grid long enough for v7x's 2 TCs


def _weighted_acts(xf, w_relu, w_tanh, w_sig, w_silu):
    """Weighted sum of [ReLU, Tanh, Sigmoid, SiLU] on float32 data."""
    relu_out = jnp.maximum(xf, 0.0)
    tanh_out = jnp.tanh(xf)                       # EUP push #1 (native tanh)
    sig_out = 0.5 * jnp.tanh(0.5 * xf) + 0.5      # EUP push #2 (logistic via tanh)
    silu_out = xf * sig_out                       # VPU mul, reuses sigmoid
    acc = w_relu * relu_out
    acc = acc + w_tanh * tanh_out
    acc = acc + w_sig * sig_out
    acc = acc + w_silu * silu_out
    return acc


def sum_activation_kernel(w_ref, x_ref, o_ref):
    """w_ref: SMEM (N_ACT,) f32 softmax-normalized weights.
       x_ref/o_ref: VMEM (block_rows, LANE) tiles."""
    # Hoist scalar SMEM reads before the vector pipeline.
    w_relu = w_ref[0]
    w_tanh = w_ref[1]
    w_sig = w_ref[2]
    w_silu = w_ref[3]

    xf = x_ref[...].astype(jnp.float32)
    o_ref[...] = _weighted_acts(xf, w_relu, w_tanh, w_sig, w_silu).astype(o_ref.dtype)


def sum_activation(x, weights):
    """x: arbitrary-shaped float array (e.g. NCHW). weights: (N_ACT,) raw params."""
    # Parameter glue: softmax over the tiny weight vector (torch.softmax(self.weights, 0)).
    normed_w = jax.nn.softmax(weights.astype(jnp.float32), axis=0)

    orig_shape = x.shape
    orig_dtype = x.dtype
    flat = x.reshape(-1)
    n = flat.shape[0]
    n_main = (n // LANE) * LANE            # lane-aligned body handled by the kernel

    pieces = []

    if n_main > 0:
        x2d = flat[:n_main].reshape(-1, LANE)   # free row-major reshape, no copy
        rows = x2d.shape[0]

        itemsize = jnp.dtype(orig_dtype).itemsize
        # Sublane packing multiple (8 rows/vreg at 32-bit, 16 at 16-bit, 32 at 8-bit).
        sub_mult = 8 * max(1, 4 // itemsize)

        # Block size from a byte budget (constant DMA/overhead ratio across dtypes).
        target_rows = max(
            sub_mult,
            (TARGET_BLOCK_BYTES // (LANE * itemsize)) // sub_mult * sub_mult,
        )
        # Cap so large tensors still produce >= MIN_GRID_STEPS grid steps (v7x megacore).
        rows_per_min_grid = pl.cdiv(pl.cdiv(rows, MIN_GRID_STEPS), sub_mult) * sub_mult
        block_rows = min(target_rows, rows_per_min_grid)
        grid = (pl.cdiv(rows, block_rows),)     # boundary blocks are masked by Pallas

        out2d = pl.pallas_call(
            sum_activation_kernel,
            out_shape=jax.ShapeDtypeStruct((rows, LANE), orig_dtype),
            grid=grid,
            in_specs=[
                pl.BlockSpec(memory_space=pltpu.MemorySpace.SMEM),    # normed weights
                pl.BlockSpec((block_rows, LANE), lambda i: (i, 0)),   # x tile
            ],
            out_specs=pl.BlockSpec((block_rows, LANE), lambda i: (i, 0)),
            compiler_params=pltpu.CompilerParams(
                dimension_semantics=("parallel",)),
        )(normed_w, x2d)
        pieces.append(out2d.reshape(-1))

    if n_main < n:
        # <128-element tail: plain jnp (cheaper than a full-tensor pad + slice pass).
        tail = flat[n_main:].astype(jnp.float32)
        tail_out = _weighted_acts(
            tail, normed_w[0], normed_w[1], normed_w[2], normed_w[3])
        pieces.append(tail_out.astype(orig_dtype))

    out_flat = pieces[0] if len(pieces) == 1 else jnp.concatenate(pieces, axis=0)
    return out_flat.reshape(orig_shape)


def sum_activation_ref(x, weights):
    """Pure-JAX reference mirroring the PyTorch forward."""
    xf = x.astype(jnp.float32)
    acts = jnp.stack(
        [jnp.maximum(xf, 0.0), jnp.tanh(xf), jax.nn.sigmoid(xf),
         xf * jax.nn.sigmoid(xf)], axis=0)
    w = jax.nn.softmax(weights.astype(jnp.float32), axis=0)
    return jnp.einsum('i,i...->...', w, acts).astype(x.dtype)


if __name__ == "__main__":
    key = jax.random.PRNGKey(0)

    # init_weights='ones' -> nn.init.ones_(self.weights); deterministic.
    weights = jnp.ones((N_ACT,), dtype=jnp.float32)

    # Small NCHW input consistent with the conv-style usage of the module
    # (element count is a multiple of 128 -> pure kernel path).
    x = jax.random.normal(key, (2, 4, 16, 16), dtype=jnp.float32)
    out = jax.block_until_ready(sum_activation(x, weights))
    ref = sum_activation_ref(x, weights)
    assert out.shape == x.shape and out.dtype == x.dtype
    assert jnp.allclose(out, ref, atol=1e-5, rtol=1e-5)

    # Non-multiple-of-128 element count -> kernel body + jnp tail path.
    x2 = jax.random.normal(jax.random.PRNGKey(1), (3, 5, 7, 9), dtype=jnp.float32)
    out2 = jax.block_until_ready(sum_activation(x2, weights))
    ref2 = sum_activation_ref(x2, weights)
    assert out2.shape == x2.shape and out2.dtype == x2.dtype
    assert jnp.allclose(out2, ref2, atol=1e-5, rtol=1e-5)

    print("KERNEL_OK")
</pallas_src>

<mosaic_0001>
module attributes {stable_mosaic.version = 11 : i64} {
  func.func @sum_activation_kernel(%arg0: i32, %arg1: memref<4xf32, #tpu.memory_space<smem>>, %arg2: memref<8x128xf32, #tpu.memory_space<vmem>>, %arg3: memref<8x128xf32, #tpu.memory_space<vmem>>) attributes {dimension_semantics = [#tpu.dimension_semantics<parallel>], iteration_bounds = array<i64: 2>, scalar_prefetch = 0 : i64, scratch_operands = 0 : i64, tpu.core_type = #tpu.core_type<tc>, window_params = [{transform_indices = @transform_0, window_bounds = array<i64: 4>}, {transform_indices = @transform_1, window_bounds = array<i64: 8, 128>}, {transform_indices = @transform_2, window_bounds = array<i64: 8, 128>}]} {
    %c0 = arith.constant 0 : index
    %0 = memref.load %arg1[%c0] : memref<4xf32, #tpu.memory_space<smem>>
    %c1 = arith.constant 1 : index
    %1 = memref.load %arg1[%c1] : memref<4xf32, #tpu.memory_space<smem>>
    %c2 = arith.constant 2 : index
    %2 = memref.load %arg1[%c2] : memref<4xf32, #tpu.memory_space<smem>>
    %c3 = arith.constant 3 : index
    %3 = memref.load %arg1[%c3] : memref<4xf32, #tpu.memory_space<smem>>
    %c0_0 = arith.constant 0 : index
    %c0_1 = arith.constant 0 : index
    %4 = vector.load %arg2[%c0_0, %c0_1] : memref<8x128xf32, #tpu.memory_space<vmem>>, vector<8x128xf32>
    %cst = arith.constant 0.000000e+00 : f32
    %5 = vector.broadcast %cst : f32 to vector<8x128xf32>
    %6 = arith.maximumf %4, %5 : vector<8x128xf32>
    %7 = math.tanh %4 : vector<8x128xf32>
    %cst_2 = arith.constant 5.000000e-01 : f32
    %8 = vector.broadcast %cst_2 : f32 to vector<8x128xf32>
    %9 = arith.mulf %8, %4 : vector<8x128xf32>
    %10 = math.tanh %9 : vector<8x128xf32>
    %cst_3 = arith.constant 5.000000e-01 : f32
    %11 = vector.broadcast %cst_3 : f32 to vector<8x128xf32>
    %12 = arith.mulf %11, %10 : vector<8x128xf32>
    %cst_4 = arith.constant 5.000000e-01 : f32
    %13 = vector.broadcast %cst_4 : f32 to vector<8x128xf32>
    %14 = arith.addf %12, %13 : vector<8x128xf32>
    %15 = arith.mulf %4, %14 : vector<8x128xf32>
    %16 = vector.broadcast %0 : f32 to vector<8x128xf32>
    %17 = arith.mulf %16, %6 : vector<8x128xf32>
    %18 = vector.broadcast %1 : f32 to vector<8x128xf32>
    %19 = arith.mulf %18, %7 : vector<8x128xf32>
    %20 = arith.addf %17, %19 : vector<8x128xf32>
    %21 = vector.broadcast %2 : f32 to vector<8x128xf32>
    %22 = arith.mulf %21, %14 : vector<8x128xf32>
    %23 = arith.addf %20, %22 : vector<8x128xf32>
    %24 = vector.broadcast %3 : f32 to vector<8x128xf32>
    %25 = arith.mulf %24, %15 : vector<8x128xf32>
    %26 = arith.addf %23, %25 : vector<8x128xf32>
    %c0_5 = arith.constant 0 : index
    %c0_6 = arith.constant 0 : index
    %27 = vector.load %arg3[%c0_5, %c0_6] : memref<8x128xf32, #tpu.memory_space<vmem>>, vector<8x128xf32>
    tpu.vector_store %arg3[%c0_5, %c0_6], %26 {strides = array<i32>} : memref<8x128xf32, #tpu.memory_space<vmem>>, vector<8x128xf32>,
    return
  }
  func.func @transform_0(%arg0: i32) -> i32 {
    %c0_i32 = arith.constant 0 : i32
    %c0_i32_0 = arith.constant 0 : i32
    return %c0_i32 : i32
  }
  func.func @transform_1(%arg0: i32) -> (i32, i32) {
    %c0_i32 = arith.constant 0 : i32
    %c0_i32_0 = arith.constant 0 : i32
    return %arg0, %c0_i32 : i32, i32
  }
  func.func @transform_2(%arg0: i32) -> (i32, i32) {
    %c0_i32 = arith.constant 0 : i32
    %c0_i32_0 = arith.constant 0 : i32
    return %arg0, %c0_i32 : i32, i32
  }
}

</mosaic_0001>

<llo_original>
// kernel: tpu_custom_call.1
$region0: #{tpu_custom_call.1}
  #allocation0 [shape = 'u32[]', space=smem, size = 0x4, offset = 0x4, fixed_abs, tag = 'smem constant byte address 0x4 - core index']
  #allocation1 [shape = 'u32[144,128]{1,0:T(1,128)}', space=vmem, size = 0x12000, scoped, tag = 'internal scratch']
  %s0 = inlined_call_operand.hbm [shape: f32[4], index: 0, kind: input, shape index: {}]
  %s1 = inlined_call_operand.hbm [shape: f32[16,128], index: 1, kind: input, shape index: {}]
  %s2 = inlined_call_operand.hbm [shape: f32[16,128], index: 2, kind: output, shape index: {}]
  %s3 = sld [smem:[#allocation0]]
  $region49: #{tpu_custom_call.1} parent=0
    _
  %s5 = ssub.s32 1, %s3
  %s6 = scalar_select 0, %s5, %s3
  $region1: #{tpu_custom_call.1} parent=0
    #allocation2 [shape = 'u8[512]{0}', space=smem, size = 0x200, scoped, tag = 'input window, operand 0, single buffered']
    #allocation3 [shape = 's32[2]{0}', space=sflag, size = 0x8, scoped, tag = 'scoped memory for tpu_custom_call.1']
    #allocation4 [shape = 's32[2]{0}', space=sflag, size = 0x8, scoped, tag = 'scoped memory for tpu_custom_call.1']
    #allocation5 [shape = 's32[2]{0}', space=sflag, size = 0x8, scoped, tag = 'scoped memory for tpu_custom_call.1']
    #allocation6 [shape = 'u8[8192]{0}', space=vmem, size = 0x2000, scoped, tag = 'input window, operand 1']
    #allocation7 [shape = 'u8[8192]{0}', space=vmem, size = 0x2000, scoped, tag = 'output window, operand 0']
    %7 = vsyncpa [#allocation5], 0
    %8 = vsyncpa [#allocation3], 0
    %s9 = scalar_lea.sflag [#allocation3], 1
    %10 = vsyncpa %s9, 0
    %11 = vsyncpa [#allocation4], 0
    %s12 = scalar_lea.sflag [#allocation4], 1
    %13 = vsyncpa %s12, 0
    loop: start=0, step=1, limit=4
    $region2: #{tpu_custom_call.1} parent=1 // loop_pre_header
      _
    $region3: #{tpu_custom_call.1} parent=1 // loop_header
      %s15 = sphi 0, %s19
      %p16 = scmp.ge.s32.totalorder %s15, 4
      %s23 = sphi 0, %s23
      %s25 = sphi 0, %s23
      %s26 = sphi 0, %s25
      %s40 = sphi 0, %s26
      %s46 = sphi 0, %s48
      %s49 = sphi 0, %s46
      %s50 = sphi 0, %s49
      %s66 = sphi 0, %s50
      %s72 = sphi 0, %s74
      %s75 = sphi 0, %s72
      %s76 = sphi 0, %s75
      %s92 = sphi 0, %s76
    $region4: #{tpu_custom_call.1} parent=1 // loop_header_branch
      %18 = sbr.rel (%p16) target = $region8
    $region5: #{tpu_custom_call.1} parent=1 // loop_body
      %s20 = ssub.s32 %s15, 1
      %s21 = ssub.s32 %s15, 2
      %s22 = sadd.s32 %s15, 1
      %s24 = sadd.s32 %s23, 1
      %p27 = scmp.eq.s32.totalorder %s15, 1
      %p28 = scmp.ne.s32.totalorder %s23, %s25
      %p29 = scmp.eq.s32.totalorder %s15, 0
      %p30 = por %p28, %p29
      %p31 = scmp.ne.s32.totalorder %s23, %s25
      %p32 = scmp.eq.s32.totalorder %s20, 1
      %p33 = por %p31, %p32
      %p34 = scmp.ne.s32.totalorder %s25, %s26
      %p35 = scmp.eq.s32.totalorder %s20, 0
      %p36 = por %p34, %p35
      %p37 = scmp.ne.s32.totalorder %s25, %s26
      %p38 = scmp.eq.s32.totalorder %s21, 1
      %p39 = por %p37, %p38
      %p41 = scmp.ne.s32.totalorder %s26, %s40
      %p42 = scmp.eq.s32.totalorder %s21, 0
      %p43 = por %p41, %p42
      %s44 = ssub.s32 %s15, %s22
      %p45 = scmp.eq.s32.totalorder %s44, 0
      %s47 = sadd.s32 %s46, 1
      %s48 = scalar_select %p45, %s46, %s47
      %p51 = pneg %p45
      %p52 = scmp.eq.s32.totalorder %s15, 1
      %p53 = por %p51, %p52
      %p54 = scmp.ne.s32.totalorder %s46, %s49
      %p55 = scmp.eq.s32.totalorder %s15, 0
      %p56 = por %p54, %p55
      %p57 = scmp.ne.s32.totalorder %s46, %s49
      %p58 = scmp.eq.s32.totalorder %s20, 1
      %p59 = por %p57, %p58
      %p60 = scmp.ne.s32.totalorder %s49, %s50
      %p61 = scmp.eq.s32.totalorder %s20, 0
      %p62 = por %p60, %p61
      %p63 = scmp.ne.s32.totalorder %s49, %s50
      %p64 = scmp.eq.s32.totalorder %s21, 1
      %p65 = por %p63, %p64
      %p67 = scmp.ne.s32.totalorder %s50, %s66
      %p68 = scmp.eq.s32.totalorder %s21, 0
      %p69 = por %p67, %p68
      %s70 = ssub.s32 %s15, %s22
      %p71 = scmp.eq.s32.totalorder %s70, 0
      %s73 = sadd.s32 %s72, 1
      %s74 = scalar_select %p71, %s72, %s73
      %p77 = pneg %p71
      %p78 = scmp.eq.s32.totalorder %s15, 1
      %p79 = por %p77, %p78
      %p80 = scmp.ne.s32.totalorder %s72, %s75
      %p81 = scmp.eq.s32.totalorder %s15, 0
      %p82 = por %p80, %p81
      %p83 = scmp.ne.s32.totalorder %s72, %s75
      %p84 = scmp.eq.s32.totalorder %s20, 1
      %p85 = por %p83, %p84
      %p86 = scmp.ne.s32.totalorder %s75, %s76
      %p87 = scmp.eq.s32.totalorder %s20, 0
      %p88 = por %p86, %p87
      %p89 = scmp.ne.s32.totalorder %s75, %s76
      %p90 = scmp.eq.s32.totalorder %s21, 1
      %p91 = por %p89, %p90
      %p93 = scmp.ne.s32.totalorder %s76, %s92
      %p94 = scmp.eq.s32.totalorder %s21, 0
      %p95 = por %p93, %p94
      %p96 = scmp.le.s32.totalorder 1, %s15
      %p97 = scmp.lt.s32.totalorder %s15, 3
      %p98 = pnand %p96, %p97
      %p99 = pneg %p98
      // Predicated region
      $region9: #{tpu_custom_call.1} parent=5 // pred_check
        _
      $region10: #{tpu_custom_call.1} parent=5 // pred_check_branch
        %101 = sbr.rel (%p98) target = $region12
      $region11: #{tpu_custom_call.1} parent=5 // pred_region
        %s102 = ssub.s32 %s15, 1
        // Predicated region
        $region13: #{tpu_custom_call.1} parent=11 // pred_check
          %p103 = pneg %p36
        $region14: #{tpu_custom_call.1} parent=11 // pred_check_branch
          %105 = sbr.rel (%p103) target = $region16
        $region15: #{tpu_custom_call.1} parent=11 // pred_region
          %s107 = ssub.s32 16, 16
          %108 = vsyncadd [#allocation5], %s107
          %111 = dma.hbm_to_smem %s0, 16, [#allocation2], [#allocation5]
        $region16: #{tpu_custom_call.1} parent=11 // pred_fallthru
          _
      $region12: #{tpu_custom_call.1} parent=5 // pred_fallthru
        _
      %p112 = scmp.lt.s32.totalorder %s15, 2
      // Predicated region
      $region17: #{tpu_custom_call.1} parent=5 // pred_check
        %p113 = pneg %p112
      $region18: #{tpu_custom_call.1} parent=5 // pred_check_branch
        %115 = sbr.rel (%p113) target = $region20
      $region19: #{tpu_custom_call.1} parent=5 // pred_region
        // Predicated region
        $region21: #{tpu_custom_call.1} parent=19 // pred_check
          %p116 = pneg %p56
        $region22: #{tpu_custom_call.1} parent=19 // pred_check_branch
          %118 = sbr.rel (%p116) target = $region24
        $region23: #{tpu_custom_call.1} parent=19 // pred_region
          %s119 = sand.u32 %s46, 1
          %s120 = scalar_lea.sflag [#allocation3], %s119
          %s121 = sand.u32 %s46, 1
          %s122 = smul.addr %s121, 8
          %s123 = scalar_lea.vmem [#allocation6], %s122
          %s125 = ssub.s32 128, 128
          %126 = vsyncadd %s120, %s125
          %s127 = smul.addr %s15, 128
          %s128 = scalar_lea.hbm %s1, %s127
          %s130 = sshll.u32 %s123, 4
          %s131 = int_to_ptr.vmem [resolvable:$true] %s130
          %133 = dma.hbm_to_vmem [thread:$0]  %s128, 128, %s131, %s120
        $region24: #{tpu_custom_call.1} parent=19 // pred_fallthru
          _
      $region20: #{tpu_custom_call.1} parent=5 // pred_fallthru
        _
      %p134 = scmp.le.s32.totalorder 1, %s15
      %p135 = scmp.lt.s32.totalorder %s15, 3
      %p136 = pnand %p134, %p135
      %p137 = pneg %p136
      // Predicated region
      $region25: #{tpu_custom_call.1} parent=5 // pred_check
        _
      $region26: #{tpu_custom_call.1} parent=5 // pred_check_branch
        %139 = sbr.rel (%p136) target = $region28
      $region27: #{tpu_custom_call.1} parent=5 // pred_region
        %s140 = ssub.s32 %s15, 1
        // Predicated region
        $region29: #{tpu_custom_call.1} parent=27 // pred_check
          %p141 = pneg %p36
        $region30: #{tpu_custom_call.1} parent=27 // pred_check_branch
          %143 = sbr.rel (%p141) target = $region32
        $region31: #{tpu_custom_call.1} parent=27 // pred_region
          %144 = dma.done [#allocation5], 16
        $region32: #{tpu_custom_call.1} parent=27 // pred_fallthru
          _
        %s145 = sand.u32 %s49, 1
        %s146 = scalar_lea.sflag [#allocation3], %s145
        %s147 = sand.u32 %s49, 1
        %s148 = smul.addr %s147, 8
        %s149 = scalar_lea.vmem [#allocation6], %s148
        // Predicated region
        $region33: #{tpu_custom_call.1} parent=27 // pred_check
          %p150 = pneg %p62
        $region34: #{tpu_custom_call.1} parent=27 // pred_check_branch
          %152 = sbr.rel (%p150) target = $region36
        $region35: #{tpu_custom_call.1} parent=27 // pred_region
          %153 = dma.done %s146, 128
        $region36: #{tpu_custom_call.1} parent=27 // pred_fallthru
          _
        %154 = sfence
        %p155 = pneg %p36
        %p156 = pneg %p33
        %s157 = sand.u32 %s49, 1
        %s158 = scalar_lea.sflag [#allocation3], %s157
        %s159 = sand.u32 %s49, 1
        %s160 = smul.addr %s159, 8
        %s161 = scalar_lea.vmem [#allocation6], %s160
        %p162 = pneg %p62
        %p163 = pneg %p59
        %p164 = pneg %p88
        %p165 = pneg %p85
        %s166 = sand.u32 %s75, 1
        %s167 = scalar_lea.sflag [#allocation4], %s166
        %s168 = sand.u32 %s75, 1
        %s169 = smul.addr %s168, 8
        %s170 = scalar_lea.vmem [#allocation7], %s169
        %s171 = sld [smem:[#allocation2]]
        %s172 = sld [smem:[#allocation2 + $0x1]]
        %s173 = sld [smem:[#allocation2 + $0x2]]
        %s174 = sld [smem:[#allocation2 + $0x3]]
        %v175 = vld [vmem:[%s149] sm:$0xff]
        %v176 = vmax.f32 %v175, 0.0
        %v177 = vtanh.pop %v175
        %v178 = vmul.f32 %v175, 0.5
        %v179 = vtanh.pop %v178
        %v180 = vmul.f32 %v179, 0.5
        %v181 = vadd.f32 %v180, 0.5
        %v182 = vmul.f32 %v175, %v181
        %v183 = vstv %s171
        %v184 = vmul.f32 %v183, %v176
        %v185 = vstv %s172
        %v186 = vmul.f32 %v185, %v177
        %v187 = vadd.f32 %v184, %v186
        %v188 = vstv %s173
        %v189 = vmul.f32 %v188, %v181
        %v190 = vadd.f32 %v187, %v189
        %v191 = vstv %s174
        %v192 = vmul.f32 %v191, %v182
        %v193 = vadd.f32 %v190, %v192
        %194 = vst [vmem:[%s170] sm:$0xff] %v193
        %s195 = sand.u32 %s75, 1
        %s196 = scalar_lea.sflag [#allocation4], %s195
        %s197 = sand.u32 %s75, 1
        %s198 = smul.addr %s197, 8
        %s199 = scalar_lea.vmem [#allocation7], %s198
        // Predicated region
        $region37: #{tpu_custom_call.1} parent=27 // pred_check
          %p200 = pneg %p85
        $region38: #{tpu_custom_call.1} parent=27 // pred_check_branch
          %202 = sbr.rel (%p200) target = $region40
        $region39: #{tpu_custom_call.1} parent=27 // pred_region
          %s204 = ssub.s32 128, 128
          %205 = vsyncadd %s196, %s204
          %s206 = smul.addr %s20, 128
          %s207 = scalar_lea.hbm %s2, %s206
          %s209 = sshll.u32 %s199, 4
          %s210 = int_to_ptr.vmem [resolvable:$true] %s209
          %212 = dma.vmem_to_hbm [thread:$0]  %s210, 128, %s207, %s196
        $region40: #{tpu_custom_call.1} parent=27 // pred_fallthru
          _
      $region28: #{tpu_custom_call.1} parent=5 // pred_fallthru
        _
      %p213 = scmp.le.s32.totalorder 2, %s15
      // Predicated region
      $region41: #{tpu_custom_call.1} parent=5 // pred_check
        %p214 = pneg %p213
      $region42: #{tpu_custom_call.1} parent=5 // pred_check_branch
        %216 = sbr.rel (%p214) target = $region44
      $region43: #{tpu_custom_call.1} parent=5 // pred_region
        %s217 = ssub.s32 %s15, 2
        // Predicated region
        $region45: #{tpu_custom_call.1} parent=43 // pred_check
          %p218 = pneg %p91
        $region46: #{tpu_custom_call.1} parent=43 // pred_check_branch
          %220 = sbr.rel (%p218) target = $region48
        $region47: #{tpu_custom_call.1} parent=43 // pred_region
          %s221 = sand.u32 %s76, 1
          %s222 = scalar_lea.sflag [#allocation4], %s221
          %s223 = sand.u32 %s76, 1
          %s224 = smul.addr %s223, 8
          %s225 = scalar_lea.vmem [#allocation7], %s224
          %226 = dma.done %s222, 128
        $region48: #{tpu_custom_call.1} parent=43 // pred_fallthru
          _
      $region44: #{tpu_custom_call.1} parent=5 // pred_fallthru
        _
    $region6: #{tpu_custom_call.1} parent=1 // loop_footer
      %s19 = sadd.s32 1, %s15
    $region7: #{tpu_custom_call.1} parent=1 // loop_footer_branch
      %14 = sbr.rel target = $region3
    $region8: #{tpu_custom_call.1} parent=1 // loop_exit
      _
    %227 = vsyncpa [#allocation3], 1
    %s228 = scalar_lea.sflag [#allocation3], 1
    %229 = vsyncpa %s228, 1
    %230 = vsyncpa [#allocation4], 1
    %s231 = scalar_lea.sflag [#allocation4], 1
    %232 = vsyncpa %s231, 1
    %233 = vsyncpa [#allocation5], 1
    %s234 = scalar_lea.sflag [#allocation5], 1
    %235 = vsyncpa %s234, 1

</llo_original>
